<compile_context>
chip_gen: v7x
topology: tpu7x:2x2x1
jax: 0.10.0
libtpu: 0.0.40
codegen_flags: <defaults>
</compile_context>

<pallas_src>
import functools
import math

import jax
import jax.numpy as jnp
from jax import lax
from jax.experimental import pallas as pl
from jax.experimental.pallas import tpu as pltpu

LANES = 128
SUBLANES = 8
MAX_BLOCK_ROWS = 2048          # (2048, 128) f32 tile == 1 MiB / input / step
SMOOTH = 1e-6


def _dice_kernel(x_ref, y_ref, out_ref, acc_xy_ref, acc_yy_ref, acc_xx_ref, *,
                 block_rows, total_rows, need_mask):
    """Streamed global reduction for the binary dice loss.

    x_ref, y_ref : VMEM (block_rows, 128) tiles in native dtype (cast in-kernel)
    out_ref      : SMEM (1,) float32 -- final scalar loss (written on last step)
    acc_*_ref    : VMEM (1, 128) float32 lane-wise partial-sum accumulators
    """
    i = pl.program_id(0)

    @pl.when(i == 0)
    def _():
        acc_xy_ref[...] = jnp.zeros_like(acc_xy_ref)
        acc_yy_ref[...] = jnp.zeros_like(acc_yy_ref)
        acc_xx_ref[...] = jnp.zeros_like(acc_xx_ref)

    x = x_ref[...].astype(jnp.float32)
    y = y_ref[...].astype(jnp.float32)

    if need_mask:
        # Last grid step is a partial block: rows >= total_rows hold undefined
        # data in the VMEM buffer.  Mask BEFORE the multiplies so garbage
        # (even NaN/Inf) never reaches the products.
        row_ids = lax.broadcasted_iota(jnp.int32, (block_rows, LANES), 0)
        valid = (row_ids + i * block_rows) < total_rows
        x = jnp.where(valid, x, 0.0)
        y = jnp.where(valid, y, 0.0)

    # All three products come from the same pair of loaded vregs (one pass).
    # Per-tile reduction is over the sublane axis only -> (1, 128) lane-wise
    # partials (vector adds); the cross-lane reduce is deferred to the end.
    acc_xy_ref[...] += jnp.sum(x * y, axis=0, keepdims=True)
    acc_yy_ref[...] += jnp.sum(y * y, axis=0, keepdims=True)
    acc_xx_ref[...] += jnp.sum(x * x, axis=0, keepdims=True)

    @pl.when(i == pl.num_programs(0) - 1)
    def _():
        intersect = jnp.sum(acc_xy_ref[...])
        y_sum = jnp.sum(acc_yy_ref[...])
        z_sum = jnp.sum(acc_xx_ref[...])
        dice = (2.0 * intersect + SMOOTH) / (z_sum + y_sum + SMOOTH)
        out_ref[0] = 1.0 - dice


@jax.jit
def binary_dice_loss(inputs, target):
    assert inputs.shape == target.shape, "predict & target shape do not match"

    n = math.prod(inputs.shape)
    x = inputs.reshape(-1)      # no dtype cast, reshape of contiguous data is free
    y = target.reshape(-1)

    tile_unit = SUBLANES * LANES        # 1024
    if n % tile_unit != 0:
        # Rare fallback: zero-pad to an (8,128)-aligned length. Zero padding is
        # exact for all three sums; common NCHW shapes skip this path entirely.
        pad = tile_unit - n % tile_unit
        x = jnp.pad(x, (0, pad))
        y = jnp.pad(y, (0, pad))

    rows = x.shape[0] // LANES          # multiple of 8
    x2 = x.reshape(rows, LANES)
    y2 = y.reshape(rows, LANES)

    block_rows = min(MAX_BLOCK_ROWS, rows)      # multiple of 8
    n_steps = pl.cdiv(rows, block_rows)
    need_mask = (rows % block_rows) != 0        # ragged last block

    kernel = functools.partial(
        _dice_kernel,
        block_rows=block_rows,
        total_rows=rows,
        need_mask=need_mask,
    )

    out = pl.pallas_call(
        kernel,
        out_shape=jax.ShapeDtypeStruct((1,), jnp.float32),
        grid_spec=pltpu.PrefetchScalarGridSpec(
            num_scalar_prefetch=0,
            grid=(n_steps,),
            in_specs=[
                pl.BlockSpec((block_rows, LANES), lambda i: (i, 0)),
                pl.BlockSpec((block_rows, LANES), lambda i: (i, 0)),
            ],
            out_specs=pl.BlockSpec(memory_space=pltpu.SMEM),
            scratch_shapes=[
                pltpu.VMEM((1, LANES), jnp.float32),
                pltpu.VMEM((1, LANES), jnp.float32),
                pltpu.VMEM((1, LANES), jnp.float32),
            ],
        ),
        compiler_params=pltpu.CompilerParams(
            dimension_semantics=("arbitrary",),   # carried accumulator
        ),
    )(x2, y2)
    return out[0]


def _reference(inputs, target):
    inputs = inputs.astype(jnp.float32)
    target = target.astype(jnp.float32)
    intersect = jnp.sum(inputs * target)
    y_sum = jnp.sum(target * target)
    z_sum = jnp.sum(inputs * inputs)
    dice = (2.0 * intersect + SMOOTH) / (z_sum + y_sum + SMOOTH)
    return 1.0 - dice


if __name__ == "__main__":
    key = jax.random.PRNGKey(0)
    k1, k2 = jax.random.split(key)

    # Primary check: NCHW, matches the PyTorch module convention.
    B, C, H, W = 2, 4, 16, 16
    score = jax.nn.sigmoid(jax.random.normal(k1, (B, C, H, W), jnp.float32))
    target = (jax.random.uniform(k2, (B, C, H, W)) > 0.5).astype(jnp.float32)

    loss = binary_dice_loss(score, target)
    loss = jax.block_until_ready(loss)
    ref = _reference(score, target)
    assert jnp.allclose(loss, ref, atol=1e-5, rtol=1e-5), (loss, ref)

    # Secondary check: non-1024-multiple element count (exercises pad fallback).
    k3, k4 = jax.random.split(k1)
    s2 = jax.nn.sigmoid(jax.random.normal(k3, (2, 3, 7, 9), jnp.float32))
    t2 = (jax.random.uniform(k4, (2, 3, 7, 9)) > 0.5).astype(jnp.float32)
    l2 = jax.block_until_ready(binary_dice_loss(s2, t2))
    assert jnp.allclose(l2, _reference(s2, t2), atol=1e-5, rtol=1e-5)

    # Third check: > one 2048-row tile with a ragged last block (mask path).
    k5, k6 = jax.random.split(k2)
    s3 = jax.nn.sigmoid(jax.random.normal(k5, (2, 4, 192, 192), jnp.float32))
    t3 = (jax.random.uniform(k6, (2, 4, 192, 192)) > 0.5).astype(jnp.float32)
    l3 = jax.block_until_ready(binary_dice_loss(s3, t3))
    assert jnp.allclose(l3, _reference(s3, t3), atol=1e-5, rtol=1e-5)

    print("KERNEL_OK")
</pallas_src>

<mosaic_0001>
module attributes {stable_mosaic.version = 11 : i64} {
  func.func @_dice_kernel(%arg0: i32, %arg1: memref<16x128xf32, #tpu.memory_space<vmem>>, %arg2: memref<16x128xf32, #tpu.memory_space<vmem>>, %arg3: memref<1xf32, #tpu.memory_space<smem>>, %arg4: memref<1x128xf32, #tpu.memory_space<vmem>>, %arg5: memref<1x128xf32, #tpu.memory_space<vmem>>, %arg6: memref<1x128xf32, #tpu.memory_space<vmem>>) attributes {dimension_semantics = [#tpu.dimension_semantics<arbitrary>], iteration_bounds = array<i64: 1>, scalar_prefetch = 0 : i64, scratch_operands = 3 : i64, tpu.core_type = #tpu.core_type<tc>, window_params = [{transform_indices = @transform_0, window_bounds = array<i64: 16, 128>}, {transform_indices = @transform_1, window_bounds = array<i64: 16, 128>}, {transform_indices = @transform_2, window_bounds = array<i64: 1>}]} {
    %c0_i32 = arith.constant 0 : i32
    %0 = arith.cmpi eq, %arg0, %c0_i32 : i32
    %1 = arith.extui %0 : i1 to i32
    %c0_i32_0 = arith.constant 0 : i32
    %2 = arith.cmpi ne, %1, %c0_i32_0 : i32
    scf.if %2 {
      %cst_20 = arith.constant 0.000000e+00 : f32
      %26 = vector.broadcast %cst_20 : f32 to vector<1x128xf32>
      %c0_21 = arith.constant 0 : index
      %c0_22 = arith.constant 0 : index
      %27 = vector.load %arg4[%c0_21, %c0_22] : memref<1x128xf32, #tpu.memory_space<vmem>>, vector<1x128xf32>
      tpu.vector_store %arg4[%c0_21, %c0_22], %26 {strides = array<i32>} : memref<1x128xf32, #tpu.memory_space<vmem>>, vector<1x128xf32>,
      %cst_23 = arith.constant 0.000000e+00 : f32
      %28 = vector.broadcast %cst_23 : f32 to vector<1x128xf32>
      %c0_24 = arith.constant 0 : index
      %c0_25 = arith.constant 0 : index
      %29 = vector.load %arg5[%c0_24, %c0_25] : memref<1x128xf32, #tpu.memory_space<vmem>>, vector<1x128xf32>
      tpu.vector_store %arg5[%c0_24, %c0_25], %28 {strides = array<i32>} : memref<1x128xf32, #tpu.memory_space<vmem>>, vector<1x128xf32>,
      %cst_26 = arith.constant 0.000000e+00 : f32
      %30 = vector.broadcast %cst_26 : f32 to vector<1x128xf32>
      %c0_27 = arith.constant 0 : index
      %c0_28 = arith.constant 0 : index
      %31 = vector.load %arg6[%c0_27, %c0_28] : memref<1x128xf32, #tpu.memory_space<vmem>>, vector<1x128xf32>
      tpu.vector_store %arg6[%c0_27, %c0_28], %30 {strides = array<i32>} : memref<1x128xf32, #tpu.memory_space<vmem>>, vector<1x128xf32>,
    } else {
    }
    %c0 = arith.constant 0 : index
    %c0_1 = arith.constant 0 : index
    %3 = vector.load %arg1[%c0, %c0_1] : memref<16x128xf32, #tpu.memory_space<vmem>>, vector<16x128xf32>
    %c0_2 = arith.constant 0 : index
    %c0_3 = arith.constant 0 : index
    %4 = vector.load %arg2[%c0_2, %c0_3] : memref<16x128xf32, #tpu.memory_space<vmem>>, vector<16x128xf32>
    %c0_4 = arith.constant 0 : index
    %c0_5 = arith.constant 0 : index
    %5 = vector.load %arg4[%c0_4, %c0_5] : memref<1x128xf32, #tpu.memory_space<vmem>>, vector<1x128xf32>
    %6 = arith.mulf %3, %4 : vector<16x128xf32>
    %cst = arith.constant dense<0.000000e+00> : vector<128xf32>
    %7 = vector.multi_reduction <add>, %6, %cst [0] : vector<16x128xf32> to vector<128xf32>
    %8 = vector.shape_cast %7 : vector<128xf32> to vector<1x128xf32>
    %9 = arith.addf %5, %8 : vector<1x128xf32>
    %c0_6 = arith.constant 0 : index
    %c0_7 = arith.constant 0 : index
    %10 = vector.load %arg4[%c0_6, %c0_7] : memref<1x128xf32, #tpu.memory_space<vmem>>, vector<1x128xf32>
    tpu.vector_store %arg4[%c0_6, %c0_7], %9 {strides = array<i32>} : memref<1x128xf32, #tpu.memory_space<vmem>>, vector<1x128xf32>,
    %c0_8 = arith.constant 0 : index
    %c0_9 = arith.constant 0 : index
    %11 = vector.load %arg5[%c0_8, %c0_9] : memref<1x128xf32, #tpu.memory_space<vmem>>, vector<1x128xf32>
    %12 = arith.mulf %4, %4 : vector<16x128xf32>
    %cst_10 = arith.constant dense<0.000000e+00> : vector<128xf32>
    %13 = vector.multi_reduction <add>, %12, %cst_10 [0] : vector<16x128xf32> to vector<128xf32>
    %14 = vector.shape_cast %13 : vector<128xf32> to vector<1x128xf32>
    %15 = arith.addf %11, %14 : vector<1x128xf32>
    %c0_11 = arith.constant 0 : index
    %c0_12 = arith.constant 0 : index
    %16 = vector.load %arg5[%c0_11, %c0_12] : memref<1x128xf32, #tpu.memory_space<vmem>>, vector<1x128xf32>
    tpu.vector_store %arg5[%c0_11, %c0_12], %15 {strides = array<i32>} : memref<1x128xf32, #tpu.memory_space<vmem>>, vector<1x128xf32>,
    %c0_13 = arith.constant 0 : index
    %c0_14 = arith.constant 0 : index
    %17 = vector.load %arg6[%c0_13, %c0_14] : memref<1x128xf32, #tpu.memory_space<vmem>>, vector<1x128xf32>
    %18 = arith.mulf %3, %3 : vector<16x128xf32>
    %cst_15 = arith.constant dense<0.000000e+00> : vector<128xf32>
    %19 = vector.multi_reduction <add>, %18, %cst_15 [0] : vector<16x128xf32> to vector<128xf32>
    %20 = vector.shape_cast %19 : vector<128xf32> to vector<1x128xf32>
    %21 = arith.addf %17, %20 : vector<1x128xf32>
    %c0_16 = arith.constant 0 : index
    %c0_17 = arith.constant 0 : index
    %22 = vector.load %arg6[%c0_16, %c0_17] : memref<1x128xf32, #tpu.memory_space<vmem>>, vector<1x128xf32>
    tpu.vector_store %arg6[%c0_16, %c0_17], %21 {strides = array<i32>} : memref<1x128xf32, #tpu.memory_space<vmem>>, vector<1x128xf32>,
    %c0_i32_18 = arith.constant 0 : i32
    %23 = arith.cmpi eq, %arg0, %c0_i32_18 : i32
    %24 = arith.extui %23 : i1 to i32
    %c0_i32_19 = arith.constant 0 : i32
    %25 = arith.cmpi ne, %24, %c0_i32_19 : i32
    scf.if %25 {
      %c0_20 = arith.constant 0 : index
      %c0_21 = arith.constant 0 : index
      %26 = vector.load %arg4[%c0_20, %c0_21] : memref<1x128xf32, #tpu.memory_space<vmem>>, vector<1x128xf32>
      %27 = vector.shape_cast %26 : vector<1x128xf32> to vector<1x1x128xf32>
      %cst_22 = arith.constant dense<0.000000e+00> : vector<1xf32>
      %28 = vector.multi_reduction <add>, %27, %cst_22 [1, 2] : vector<1x1x128xf32> to vector<1xf32>
      %29 = vector.shape_cast %28 : vector<1xf32> to vector<1x1x1xf32>
      %30 = vector.extract %29[0, 0, 0] : f32 from vector<1x1x1xf32>
      %c0_23 = arith.constant 0 : index
      %c0_24 = arith.constant 0 : index
      %31 = vector.load %arg5[%c0_23, %c0_24] : memref<1x128xf32, #tpu.memory_space<vmem>>, vector<1x128xf32>
      %32 = vector.shape_cast %31 : vector<1x128xf32> to vector<1x1x128xf32>
      %cst_25 = arith.constant dense<0.000000e+00> : vector<1xf32>
      %33 = vector.multi_reduction <add>, %32, %cst_25 [1, 2] : vector<1x1x128xf32> to vector<1xf32>
      %34 = vector.shape_cast %33 : vector<1xf32> to vector<1x1x1xf32>
      %35 = vector.extract %34[0, 0, 0] : f32 from vector<1x1x1xf32>
      %c0_26 = arith.constant 0 : index
      %c0_27 = arith.constant 0 : index
      %36 = vector.load %arg6[%c0_26, %c0_27] : memref<1x128xf32, #tpu.memory_space<vmem>>, vector<1x128xf32>
      %37 = vector.shape_cast %36 : vector<1x128xf32> to vector<1x1x128xf32>
      %cst_28 = arith.constant dense<0.000000e+00> : vector<1xf32>
      %38 = vector.multi_reduction <add>, %37, %cst_28 [1, 2] : vector<1x1x128xf32> to vector<1xf32>
      %39 = vector.shape_cast %38 : vector<1xf32> to vector<1x1x1xf32>
      %40 = vector.extract %39[0, 0, 0] : f32 from vector<1x1x1xf32>
      %cst_29 = arith.constant 2.000000e+00 : f32
      %41 = arith.mulf %cst_29, %30 : f32
      %cst_30 = arith.constant 9.99999997E-7 : f32
      %42 = arith.addf %41, %cst_30 : f32
      %43 = arith.addf %40, %35 : f32
      %cst_31 = arith.constant 9.99999997E-7 : f32
      %44 = arith.addf %43, %cst_31 : f32
      %45 = arith.divf %42, %44 : f32
      %cst_32 = arith.constant 1.000000e+00 : f32
      %46 = arith.subf %cst_32, %45 : f32
      %c0_33 = arith.constant 0 : index
      %47 = memref.load %arg3[%c0_33] : memref<1xf32, #tpu.memory_space<smem>>
      memref.store %46, %arg3[%c0_33] : memref<1xf32, #tpu.memory_space<smem>>
    } else {
    }
    return
  }
  func.func @transform_0(%arg0: i32) -> (i32, i32) {
    %c0_i32 = arith.constant 0 : i32
    %c0_i32_0 = arith.constant 0 : i32
    return %arg0, %c0_i32 : i32, i32
  }
  func.func @transform_1(%arg0: i32) -> (i32, i32) {
    %c0_i32 = arith.constant 0 : i32
    %c0_i32_0 = arith.constant 0 : i32
    return %arg0, %c0_i32 : i32, i32
  }
  func.func @transform_2(%arg0: i32) -> i32 {
    %c0_i32 = arith.constant 0 : i32
    %c0_i32_0 = arith.constant 0 : i32
    return %c0_i32 : i32
  }
}

</mosaic_0001>

<llo_original>
// kernel: binary_dice_loss.1
$region0: #{binary_dice_loss.1}
  #allocation0 [shape = 'u32[]', space=smem, size = 0x4, offset = 0x4, fixed_abs, tag = 'smem constant byte address 0x4 - core index']
  #allocation1 [shape = 'u32[144,128]{1,0:T(1,128)}', space=vmem, size = 0x12000, scoped, tag = 'internal scratch']
  #allocation2 [shape = 'f32[1,128]{1,0:T(1,128)}', space=vmem, size = 0x200, scoped, tag = 'scratch operand']
  #allocation3 [shape = 'f32[1,128]{1,0:T(1,128)}', space=vmem, size = 0x200, scoped, tag = 'scratch operand']
  #allocation4 [shape = 'f32[1,128]{1,0:T(1,128)}', space=vmem, size = 0x200, scoped, tag = 'scratch operand']
  %s0 = inlined_call_operand.vmem [shape: f32[16,128], index: 0, kind: input, shape index: {}]
  %s1 = inlined_call_operand.vmem [shape: f32[16,128], index: 1, kind: input, shape index: {}]
  %s2 = inlined_call_operand.hbm [shape: f32[1], index: 2, kind: output, shape index: {}]
  %s3 = sld [smem:[#allocation0]]
  $region26: #{binary_dice_loss.1} parent=0
    _
  %s5 = ssub.s32 1, %s3
  %s6 = scalar_select 0, %s5, %s3
  $region1: #{binary_dice_loss.1} parent=0
    #allocation5 [shape = 'u8[512]{0}', space=smem, size = 0x200, scoped, tag = 'output window, operand 0, single buffered']
    #allocation6 [shape = 's32[1]{0}', space=sflag, size = 0x4, scoped, tag = 'scoped memory for binary_dice_loss.1']
    %7 = vsyncpa [#allocation6], 0
    // Predicated region
    $region2: #{binary_dice_loss.1} parent=1 // pred_check
      _
    $region3: #{binary_dice_loss.1} parent=1 // pred_check_branch
      %9 = sbr.rel (0) target = $region5
    $region4: #{binary_dice_loss.1} parent=1 // pred_region
      _
    $region5: #{binary_dice_loss.1} parent=1 // pred_fallthru
      _
    // Predicated region
    $region6: #{binary_dice_loss.1} parent=1 // pred_check
      _
    $region7: #{binary_dice_loss.1} parent=1 // pred_check_branch
      %11 = sbr.rel (0) target = $region9
    $region8: #{binary_dice_loss.1} parent=1 // pred_region
      _
    $region9: #{binary_dice_loss.1} parent=1 // pred_fallthru
      _
    %p12 = scmp.eq.s32.totalorder 0, 0
    // Predicated region
    $region10: #{binary_dice_loss.1} parent=1 // pred_check
      %p13 = pneg %p12
    $region11: #{binary_dice_loss.1} parent=1 // pred_check_branch
      %15 = sbr.rel (%p13) target = $region13
    $region12: #{binary_dice_loss.1} parent=1 // pred_region
      %16 = vst [vmem:[#allocation2] sm:$0x1] 0.0
      %17 = vst [vmem:[#allocation3] sm:$0x1] 0.0
      %18 = vst [vmem:[#allocation4] sm:$0x1] 0.0
    $region13: #{binary_dice_loss.1} parent=1 // pred_fallthru
      _
    %v19 = vld [vmem:[%s0] sm:$0xff]
    %v20 = vld [vmem:[%s0 + $0x8] sm:$0xff]
    %v21 = vld [vmem:[%s1] sm:$0xff]
    %v22 = vld [vmem:[%s1 + $0x8] sm:$0xff]
    %v23 = vld [vmem:[#allocation2] sm:$0x1]
    %v24 = vmul.f32 %v19, %v21
    %v25 = vmul.f32 %v20, %v22
    %v26 = vadd.f32 %v24, %v25
    %v27 = vrot.slane %v26, 4
    %v28 = vadd.f32 %v26, %v27
    %v29 = vrot.slane %v28, 2
    %v30 = vadd.f32 %v28, %v29
    %v31 = vrot.slane %v30, 1
    %v32 = vadd.f32 %v30, %v31
    %v33 = vadd.f32 %v23, %v32
    %34 = vst [vmem:[#allocation2] sm:$0x1] %v33
    %v35 = vld [vmem:[#allocation3] sm:$0x1]
    %v36 = vmul.f32 %v21, %v21
    %v37 = vmul.f32 %v22, %v22
    %v38 = vadd.f32 %v36, %v37
    %v39 = vrot.slane %v38, 4
    %v40 = vadd.f32 %v38, %v39
    %v41 = vrot.slane %v40, 2
    %v42 = vadd.f32 %v40, %v41
    %v43 = vrot.slane %v42, 1
    %v44 = vadd.f32 %v42, %v43
    %v45 = vadd.f32 %v35, %v44
    %46 = vst [vmem:[#allocation3] sm:$0x1] %v45
    %v47 = vld [vmem:[#allocation4] sm:$0x1]
    %v48 = vmul.f32 %v19, %v19
    %v49 = vmul.f32 %v20, %v20
    %v50 = vadd.f32 %v48, %v49
    %v51 = vrot.slane %v50, 4
    %v52 = vadd.f32 %v50, %v51
    %v53 = vrot.slane %v52, 2
    %v54 = vadd.f32 %v52, %v53
    %v55 = vrot.slane %v54, 1
    %v56 = vadd.f32 %v54, %v55
    %v57 = vadd.f32 %v47, %v56
    %58 = vst [vmem:[#allocation4] sm:$0x1] %v57
    // Predicated region
    $region14: #{binary_dice_loss.1} parent=1 // pred_check
      %p59 = pneg %p12
    $region15: #{binary_dice_loss.1} parent=1 // pred_check_branch
      %61 = sbr.rel (%p59) target = $region17
    $region16: #{binary_dice_loss.1} parent=1 // pred_region
      %v62 = vld [vmem:[#allocation2] sm:$0x1]
      %vm63 = vcmask 1040384
      %v64 = vsel %vm63, %v62, 0.0
      %65 = vadd.xlane.f32.xlu0 %v64
      %v66 = vpop.xlane.xlu0 %65
      %v67 = vrot.slane %v66, 4
      %v68 = vadd.f32 %v66, %v67
      %v69 = vrot.slane %v68, 2
      %v70 = vadd.f32 %v68, %v69
      %v71 = vrot.slane %v70, 1
      %v72 = vadd.f32 %v70, %v71
      %s73 = vtos %v72
      %v74 = vld [vmem:[#allocation3] sm:$0x1]
      %v75 = vsel %vm63, %v74, 0.0
      %76 = vadd.xlane.f32.xlu0 %v75
      %v77 = vpop.xlane.xlu0 %76
      %v78 = vrot.slane %v77, 4
      %v79 = vadd.f32 %v77, %v78
      %v80 = vrot.slane %v79, 2
      %v81 = vadd.f32 %v79, %v80
      %v82 = vrot.slane %v81, 1
      %v83 = vadd.f32 %v81, %v82
      %s84 = vtos %v83
      %v85 = vld [vmem:[#allocation4] sm:$0x1]
      %v86 = vsel %vm63, %v85, 0.0
      %87 = vadd.xlane.f32.xlu0 %v86
      %v88 = vpop.xlane.xlu0 %87
      %v89 = vrot.slane %v88, 4
      %v90 = vadd.f32 %v88, %v89
      %v91 = vrot.slane %v90, 2
      %v92 = vadd.f32 %v90, %v91
      %v93 = vrot.slane %v92, 1
      %v94 = vadd.f32 %v92, %v93
      %s95 = vtos %v94
      %s96 = smul.f32 %s73, 2.0
      %s97 = sadd.f32 %s96, 1e-06
      %s98 = sadd.f32 %s95, %s84
      %s99 = sadd.f32 %s98, 1e-06
      %v100 = vstv %s99
      %v101 = vrcp.pop %v100
      %s102 = vtos %v101
      %s103 = smul.f32 %s97, %s102
      %s104 = ssub.f32 1.0, %s103
      %s105 = scalar_lea.smem [#allocation5], 0
      %106 = sst [smem:[%s105]] %s104
    $region17: #{binary_dice_loss.1} parent=1 // pred_fallthru
      _
    // Predicated region
    $region18: #{binary_dice_loss.1} parent=1 // pred_check
      _
    $region19: #{binary_dice_loss.1} parent=1 // pred_check_branch
      %108 = sbr.rel (0) target = $region21
    $region20: #{binary_dice_loss.1} parent=1 // pred_region
      %s110 = ssub.s32 16, 16
      %111 = vsyncadd [#allocation6], %s110
      %114 = dma.smem_to_hbm [#allocation5], 16, %s2, [#allocation6]
    $region21: #{binary_dice_loss.1} parent=1 // pred_fallthru
      _
    // Predicated region
    $region22: #{binary_dice_loss.1} parent=1 // pred_check
      _
    $region23: #{binary_dice_loss.1} parent=1 // pred_check_branch
      %116 = sbr.rel (0) target = $region25
    $region24: #{binary_dice_loss.1} parent=1 // pred_region
      %117 = dma.done [#allocation6], 16
    $region25: #{binary_dice_loss.1} parent=1 // pred_fallthru
      _
    %118 = sfence
    %119 = vsyncpa [#allocation6], 1

</llo_original>
